<compile_context>
chip_gen: v6e
topology: v6e:2x2x1
jax: 0.10.0
libtpu: 0.0.40
codegen_flags: <defaults>
</compile_context>

<pallas_src>
import jax
import jax.numpy as jnp
from jax.experimental import pallas as pl
from jax.experimental.pallas import tpu as pltpu


def _se_gate_kernel(gate_ref, x_ref, o_ref):
    # gate_ref: (1|N, C_blk, 1), x_ref/o_ref: (1|N, C_blk, HW_blk)
    # Sigmoid on the tiny gate column (EUP exp path), f32 multiply with a lane
    # broadcast, single cast to the output dtype.
    sig = jax.nn.sigmoid(gate_ref[...].astype(jnp.float32))
    o_ref[...] = (sig * x_ref[...].astype(jnp.float32)).astype(o_ref.dtype)


def sigmoid_mul(gate_nchw, x_nchw, *,
                target_block_bytes=2 << 20,   # ~2 MiB x-blocks (raise to 4<<20 on v6e/v7x)
                small_bytes=6 << 20,          # keep single-block path inside v5e VMEM
                donate_x=False):
    """out = sigmoid(gate) * x, gate: (N, C, 1, 1), x: (N, C, H, W)."""
    n, c, h, w = x_nchw.shape
    assert gate_nchw.shape == (n, c, 1, 1)
    hw = h * w

    # Free reshapes (no transpose, no HBM traffic): channels on sublanes,
    # spatial on the lane (last) axis, gate broadcast along lanes.
    x3d = x_nchw.reshape(n, c, hw)      # (N, C, HW)
    g3d = gate_nchw.reshape(n, c, 1)    # (N, C, 1)

    io_alias = {1: 0} if donate_x else {}
    total_bytes = x3d.size * x3d.dtype.itemsize

    if total_bytes <= small_bytes:
        # Whole problem as one resident VMEM block: no grid, no pipeline bookkeeping.
        out3d = pl.pallas_call(
            _se_gate_kernel,
            out_shape=jax.ShapeDtypeStruct((n, c, hw), x_nchw.dtype),
            in_specs=[
                pl.BlockSpec(memory_space=pltpu.MemorySpace.VMEM),
                pl.BlockSpec(memory_space=pltpu.MemorySpace.VMEM),
            ],
            out_specs=pl.BlockSpec(memory_space=pltpu.MemorySpace.VMEM),
            input_output_aliases=io_alias,
        )(g3d, x3d)
    else:
        # Production-size path: tile the channel (sublane) axis, keep HW full on
        # the lane axis; shard batch/channel tiles across cores.
        bytes_per_chan_row = hw * x3d.dtype.itemsize
        tc = (max(1, target_block_bytes // bytes_per_chan_row) // 8) * 8
        tc = max(8, min(tc, c))
        if tc >= c:
            tc = c  # full channel extent satisfies the block-shape rule
            if n == 1 and c > 8:
                # Keep >= 2 channel tiles so the "parallel" grid can be split
                # across v7x's two TensorCores even with a degenerate batch axis.
                tc = max(8, ((pl.cdiv(c, 2) + 7) // 8) * 8)

        grid = (n, pl.cdiv(c, tc))
        out3d = pl.pallas_call(
            _se_gate_kernel,
            out_shape=jax.ShapeDtypeStruct((n, c, hw), x_nchw.dtype),
            grid=grid,
            in_specs=[
                pl.BlockSpec((1, tc, 1), lambda b, ci: (b, ci, 0)),
                pl.BlockSpec((1, tc, hw), lambda b, ci: (b, ci, 0)),
            ],
            out_specs=pl.BlockSpec((1, tc, hw), lambda b, ci: (b, ci, 0)),
            input_output_aliases=io_alias,
            compiler_params=pltpu.CompilerParams(
                dimension_semantics=("parallel", "parallel")),
        )(g3d, x3d)

    return out3d.reshape(n, c, h, w)


if __name__ == "__main__":
    key = jax.random.PRNGKey(0)
    k1, k2 = jax.random.split(key)

    # Shapes from the module: x245 = (1, 440, 1, 1), x241 = (1, 440, 7, 7)
    x245 = jax.random.normal(k1, (1, 440, 1, 1), dtype=jnp.float32)
    x241 = jax.random.normal(k2, (1, 440, 7, 7), dtype=jnp.float32)

    ref = jax.nn.sigmoid(x245) * x241

    # Path 1: single-block VMEM path (real-shape case).
    out_small = jax.block_until_ready(sigmoid_mul(x245, x241))
    assert out_small.shape == (1, 440, 7, 7)
    assert jnp.allclose(out_small, ref, atol=1e-6, rtol=1e-6)

    # Path 2: force the tiled production path on the same inputs to exercise the grid.
    out_tiled = jax.block_until_ready(sigmoid_mul(x245, x241, small_bytes=0))
    assert jnp.allclose(out_tiled, ref, atol=1e-6, rtol=1e-6)

    print("KERNEL_OK")
</pallas_src>

<mosaic_0001>
module attributes {stable_mosaic.version = 11 : i64} {
  func.func @_se_gate_kernel(%arg0: memref<1x440x1xf32, #tpu.memory_space<vmem>>, %arg1: memref<1x440x49xf32, #tpu.memory_space<vmem>>, %arg2: memref<1x440x49xf32, #tpu.memory_space<vmem>>) attributes {dimension_semantics = [], scalar_prefetch = 0 : i64, scratch_operands = 0 : i64, tpu.core_type = #tpu.core_type<tc>} {
    %c0 = arith.constant 0 : index
    %c0_0 = arith.constant 0 : index
    %c0_1 = arith.constant 0 : index
    %0 = vector.load %arg0[%c0, %c0_0, %c0_1] : memref<1x440x1xf32, #tpu.memory_space<vmem>>, vector<1x440x1xf32>
    %1 = arith.negf %0 : vector<1x440x1xf32>
    %2 = math.exp %1 : vector<1x440x1xf32>
    %cst = arith.constant 1.000000e+00 : f32
    %3 = vector.broadcast %cst : f32 to vector<1x440x1xf32>
    %4 = arith.addf %3, %2 : vector<1x440x1xf32>
    %5 = arith.divf %3, %4 : vector<1x440x1xf32>
    %c0_2 = arith.constant 0 : index
    %c0_3 = arith.constant 0 : index
    %c0_4 = arith.constant 0 : index
    %6 = vector.load %arg1[%c0_2, %c0_3, %c0_4] : memref<1x440x49xf32, #tpu.memory_space<vmem>>, vector<1x440x49xf32>
    %7 = vector.broadcast %5 : vector<1x440x1xf32> to vector<1x440x49xf32>
    %8 = arith.mulf %7, %6 : vector<1x440x49xf32>
    %c0_5 = arith.constant 0 : index
    %c0_6 = arith.constant 0 : index
    %c0_7 = arith.constant 0 : index
    %9 = vector.load %arg2[%c0_5, %c0_6, %c0_7] : memref<1x440x49xf32, #tpu.memory_space<vmem>>, vector<1x440x49xf32>
    tpu.vector_store %arg2[%c0_5, %c0_6, %c0_7], %8 {strides = array<i32>} : memref<1x440x49xf32, #tpu.memory_space<vmem>>, vector<1x440x49xf32>,
    return
  }
}

</mosaic_0001>

<llo_original>
// kernel: tpu_custom_call.1
$region0: #{tpu_custom_call.1}
  #allocation0 [shape = 'u32[]', space=smem, size = 0x4, offset = 0x4, fixed_abs, tag = 'smem constant byte address 0x4 - core index']
  #allocation1 [shape = 'u32[144,128]{1,0:T(1,128)}', space=vmem, size = 0x12000, scoped, tag = 'internal scratch']
  %s0 = inlined_call_operand.vmem [shape: f32[1,440,1], index: 0, kind: input, shape index: {}]
  %s1 = inlined_call_operand.vmem [shape: f32[1,440,49], index: 1, kind: input, shape index: {}]
  %s2 = inlined_call_operand.vmem [shape: f32[1,440,49], index: 2, kind: output, shape index: {}]
  %s3 = sld [smem:[#allocation0]]
  $region18: #{tpu_custom_call.1} parent=0
    _
  %s5 = ssub.s32 1, %s3
  %s6 = scalar_select 0, %s5, %s3
  // Predicated region
  $region2: #{tpu_custom_call.1} parent=0 // pred_check
    _
  $region3: #{tpu_custom_call.1} parent=0 // pred_check_branch
    %8 = sbr.rel (0) target = $region5
  $region4: #{tpu_custom_call.1} parent=0 // pred_region
    _
  $region5: #{tpu_custom_call.1} parent=0 // pred_fallthru
    _
  // Predicated region
  $region6: #{tpu_custom_call.1} parent=0 // pred_check
    _
  $region7: #{tpu_custom_call.1} parent=0 // pred_check_branch
    %10 = sbr.rel (0) target = $region9
  $region8: #{tpu_custom_call.1} parent=0 // pred_region
    _
  $region9: #{tpu_custom_call.1} parent=0 // pred_fallthru
    _
  %v11 = vld [vmem:[%s0] sm:$0xff]
  %v12 = vld [vmem:[%s0 + $0x8] sm:$0xff]
  %v13 = vld [vmem:[%s0 + $0x10] sm:$0xff]
  %v14 = vld [vmem:[%s0 + $0x18] sm:$0xff]
  %v15 = vld [vmem:[%s0 + $0x20] sm:$0xff]
  %v16 = vld [vmem:[%s0 + $0x28] sm:$0xff]
  %v17 = vld [vmem:[%s0 + $0x30] sm:$0xff]
  %v18 = vld [vmem:[%s0 + $0x38] sm:$0xff]
  %v19 = vld [vmem:[%s0 + $0x40] sm:$0xff]
  %v20 = vld [vmem:[%s0 + $0x48] sm:$0xff]
  %v21 = vld [vmem:[%s0 + $0x50] sm:$0xff]
  %v22 = vld [vmem:[%s0 + $0x58] sm:$0xff]
  %v23 = vld [vmem:[%s0 + $0x60] sm:$0xff]
  %v24 = vld [vmem:[%s0 + $0x68] sm:$0xff]
  %v25 = vld [vmem:[%s0 + $0x70] sm:$0xff]
  %v26 = vld [vmem:[%s0 + $0x78] sm:$0xff]
  %v27 = vld [vmem:[%s0 + $0x80] sm:$0xff]
  %v28 = vld [vmem:[%s0 + $0x88] sm:$0xff]
  %v29 = vld [vmem:[%s0 + $0x90] sm:$0xff]
  %v30 = vld [vmem:[%s0 + $0x98] sm:$0xff]
  %v31 = vld [vmem:[%s0 + $0xa0] sm:$0xff]
  %v32 = vld [vmem:[%s0 + $0xa8] sm:$0xff]
  %v33 = vld [vmem:[%s0 + $0xb0] sm:$0xff]
  %v34 = vld [vmem:[%s0 + $0xb8] sm:$0xff]
  %v35 = vld [vmem:[%s0 + $0xc0] sm:$0xff]
  %v36 = vld [vmem:[%s0 + $0xc8] sm:$0xff]
  %v37 = vld [vmem:[%s0 + $0xd0] sm:$0xff]
  %v38 = vld [vmem:[%s0 + $0xd8] sm:$0xff]
  %v39 = vld [vmem:[%s0 + $0xe0] sm:$0xff]
  %v40 = vld [vmem:[%s0 + $0xe8] sm:$0xff]
  %v41 = vld [vmem:[%s0 + $0xf0] sm:$0xff]
  %v42 = vld [vmem:[%s0 + $0xf8] sm:$0xff]
  %v43 = vld [vmem:[%s0 + $0x100] sm:$0xff]
  %v44 = vld [vmem:[%s0 + $0x108] sm:$0xff]
  %v45 = vld [vmem:[%s0 + $0x110] sm:$0xff]
  %v46 = vld [vmem:[%s0 + $0x118] sm:$0xff]
  %v47 = vld [vmem:[%s0 + $0x120] sm:$0xff]
  %v48 = vld [vmem:[%s0 + $0x128] sm:$0xff]
  %v49 = vld [vmem:[%s0 + $0x130] sm:$0xff]
  %v50 = vld [vmem:[%s0 + $0x138] sm:$0xff]
  %v51 = vld [vmem:[%s0 + $0x140] sm:$0xff]
  %v52 = vld [vmem:[%s0 + $0x148] sm:$0xff]
  %v53 = vld [vmem:[%s0 + $0x150] sm:$0xff]
  %v54 = vld [vmem:[%s0 + $0x158] sm:$0xff]
  %v55 = vld [vmem:[%s0 + $0x160] sm:$0xff]
  %v56 = vld [vmem:[%s0 + $0x168] sm:$0xff]
  %v57 = vld [vmem:[%s0 + $0x170] sm:$0xff]
  %v58 = vld [vmem:[%s0 + $0x178] sm:$0xff]
  %v59 = vld [vmem:[%s0 + $0x180] sm:$0xff]
  %v60 = vld [vmem:[%s0 + $0x188] sm:$0xff]
  %v61 = vld [vmem:[%s0 + $0x190] sm:$0xff]
  %v62 = vld [vmem:[%s0 + $0x198] sm:$0xff]
  %v63 = vld [vmem:[%s0 + $0x1a0] sm:$0xff]
  %v64 = vld [vmem:[%s0 + $0x1a8] sm:$0xff]
  %v65 = vld [vmem:[%s0 + $0x1b0] sm:$0xff]
  %v66 = vxor.u32 %v11, 2147483648
  %v67 = vxor.u32 %v12, 2147483648
  %v68 = vxor.u32 %v13, 2147483648
  %v69 = vxor.u32 %v14, 2147483648
  %v70 = vxor.u32 %v15, 2147483648
  %v71 = vxor.u32 %v16, 2147483648
  %v72 = vxor.u32 %v17, 2147483648
  %v73 = vxor.u32 %v18, 2147483648
  %v74 = vxor.u32 %v19, 2147483648
  %v75 = vxor.u32 %v20, 2147483648
  %v76 = vxor.u32 %v21, 2147483648
  %v77 = vxor.u32 %v22, 2147483648
  %v78 = vxor.u32 %v23, 2147483648
  %v79 = vxor.u32 %v24, 2147483648
  %v80 = vxor.u32 %v25, 2147483648
  %v81 = vxor.u32 %v26, 2147483648
  %v82 = vxor.u32 %v27, 2147483648
  %v83 = vxor.u32 %v28, 2147483648
  %v84 = vxor.u32 %v29, 2147483648
  %v85 = vxor.u32 %v30, 2147483648
  %v86 = vxor.u32 %v31, 2147483648
  %v87 = vxor.u32 %v32, 2147483648
  %v88 = vxor.u32 %v33, 2147483648
  %v89 = vxor.u32 %v34, 2147483648
  %v90 = vxor.u32 %v35, 2147483648
  %v91 = vxor.u32 %v36, 2147483648
  %v92 = vxor.u32 %v37, 2147483648
  %v93 = vxor.u32 %v38, 2147483648
  %v94 = vxor.u32 %v39, 2147483648
  %v95 = vxor.u32 %v40, 2147483648
  %v96 = vxor.u32 %v41, 2147483648
  %v97 = vxor.u32 %v42, 2147483648
  %v98 = vxor.u32 %v43, 2147483648
  %v99 = vxor.u32 %v44, 2147483648
  %v100 = vxor.u32 %v45, 2147483648
  %v101 = vxor.u32 %v46, 2147483648
  %v102 = vxor.u32 %v47, 2147483648
  %v103 = vxor.u32 %v48, 2147483648
  %v104 = vxor.u32 %v49, 2147483648
  %v105 = vxor.u32 %v50, 2147483648
  %v106 = vxor.u32 %v51, 2147483648
  %v107 = vxor.u32 %v52, 2147483648
  %v108 = vxor.u32 %v53, 2147483648
  %v109 = vxor.u32 %v54, 2147483648
  %v110 = vxor.u32 %v55, 2147483648
  %v111 = vxor.u32 %v56, 2147483648
  %v112 = vxor.u32 %v57, 2147483648
  %v113 = vxor.u32 %v58, 2147483648
  %v114 = vxor.u32 %v59, 2147483648
  %v115 = vxor.u32 %v60, 2147483648
  %v116 = vxor.u32 %v61, 2147483648
  %v117 = vxor.u32 %v62, 2147483648
  %v118 = vxor.u32 %v63, 2147483648
  %v119 = vxor.u32 %v64, 2147483648
  %v120 = vxor.u32 %v65, 2147483648
  %v121 = vmul.f32 %v66, 1.442695
  %v122 = vpow.pop %v121
  %v123 = vmul.f32 %v67, 1.442695
  %v124 = vpow.pop %v123
  %v125 = vmul.f32 %v68, 1.442695
  %v126 = vpow.pop %v125
  %v127 = vmul.f32 %v69, 1.442695
  %v128 = vpow.pop %v127
  %v129 = vmul.f32 %v70, 1.442695
  %v130 = vpow.pop %v129
  %v131 = vmul.f32 %v71, 1.442695
  %v132 = vpow.pop %v131
  %v133 = vmul.f32 %v72, 1.442695
  %v134 = vpow.pop %v133
  %v135 = vmul.f32 %v73, 1.442695
  %v136 = vpow.pop %v135
  %v137 = vmul.f32 %v74, 1.442695
  %v138 = vpow.pop %v137
  %v139 = vmul.f32 %v75, 1.442695
  %v140 = vpow.pop %v139
  %v141 = vmul.f32 %v76, 1.442695
  %v142 = vpow.pop %v141
  %v143 = vmul.f32 %v77, 1.442695
  %v144 = vpow.pop %v143
  %v145 = vmul.f32 %v78, 1.442695
  %v146 = vpow.pop %v145
  %v147 = vmul.f32 %v79, 1.442695
  %v148 = vpow.pop %v147
  %v149 = vmul.f32 %v80, 1.442695
  %v150 = vpow.pop %v149
  %v151 = vmul.f32 %v81, 1.442695
  %v152 = vpow.pop %v151
  %v153 = vmul.f32 %v82, 1.442695
  %v154 = vpow.pop %v153
  %v155 = vmul.f32 %v83, 1.442695
  %v156 = vpow.pop %v155
  %v157 = vmul.f32 %v84, 1.442695
  %v158 = vpow.pop %v157
  %v159 = vmul.f32 %v85, 1.442695
  %v160 = vpow.pop %v159
  %v161 = vmul.f32 %v86, 1.442695
  %v162 = vpow.pop %v161
  %v163 = vmul.f32 %v87, 1.442695
  %v164 = vpow.pop %v163
  %v165 = vmul.f32 %v88, 1.442695
  %v166 = vpow.pop %v165
  %v167 = vmul.f32 %v89, 1.442695
  %v168 = vpow.pop %v167
  %v169 = vmul.f32 %v90, 1.442695
  %v170 = vpow.pop %v169
  %v171 = vmul.f32 %v91, 1.442695
  %v172 = vpow.pop %v171
  %v173 = vmul.f32 %v92, 1.442695
  %v174 = vpow.pop %v173
  %v175 = vmul.f32 %v93, 1.442695
  %v176 = vpow.pop %v175
  %v177 = vmul.f32 %v94, 1.442695
  %v178 = vpow.pop %v177
  %v179 = vmul.f32 %v95, 1.442695
  %v180 = vpow.pop %v179
  %v181 = vmul.f32 %v96, 1.442695
  %v182 = vpow.pop %v181
  %v183 = vmul.f32 %v97, 1.442695
  %v184 = vpow.pop %v183
  %v185 = vmul.f32 %v98, 1.442695
  %v186 = vpow.pop %v185
  %v187 = vmul.f32 %v99, 1.442695
  %v188 = vpow.pop %v187
  %v189 = vmul.f32 %v100, 1.442695
  %v190 = vpow.pop %v189
  %v191 = vmul.f32 %v101, 1.442695
  %v192 = vpow.pop %v191
  %v193 = vmul.f32 %v102, 1.442695
  %v194 = vpow.pop %v193
  %v195 = vmul.f32 %v103, 1.442695
  %v196 = vpow.pop %v195
  %v197 = vmul.f32 %v104, 1.442695
  %v198 = vpow.pop %v197
  %v199 = vmul.f32 %v105, 1.442695
  %v200 = vpow.pop %v199
  %v201 = vmul.f32 %v106, 1.442695
  %v202 = vpow.pop %v201
  %v203 = vmul.f32 %v107, 1.442695
  %v204 = vpow.pop %v203
  %v205 = vmul.f32 %v108, 1.442695
  %v206 = vpow.pop %v205
  %v207 = vmul.f32 %v109, 1.442695
  %v208 = vpow.pop %v207
  %v209 = vmul.f32 %v110, 1.442695
  %v210 = vpow.pop %v209
  %v211 = vmul.f32 %v111, 1.442695
  %v212 = vpow.pop %v211
  %v213 = vmul.f32 %v112, 1.442695
  %v214 = vpow.pop %v213
  %v215 = vmul.f32 %v113, 1.442695
  %v216 = vpow.pop %v215
  %v217 = vmul.f32 %v114, 1.442695
  %v218 = vpow.pop %v217
  %v219 = vmul.f32 %v115, 1.442695
  %v220 = vpow.pop %v219
  %v221 = vmul.f32 %v116, 1.442695
  %v222 = vpow.pop %v221
  %v223 = vmul.f32 %v117, 1.442695
  %v224 = vpow.pop %v223
  %v225 = vmul.f32 %v118, 1.442695
  %v226 = vpow.pop %v225
  %v227 = vmul.f32 %v119, 1.442695
  %v228 = vpow.pop %v227
  %v229 = vmul.f32 %v120, 1.442695
  %v230 = vpow.pop %v229
  %v231 = vadd.f32 %v122, 1.0
  %v232 = vadd.f32 %v124, 1.0
  %v233 = vadd.f32 %v126, 1.0
  %v234 = vadd.f32 %v128, 1.0
  %v235 = vadd.f32 %v130, 1.0
  %v236 = vadd.f32 %v132, 1.0
  %v237 = vadd.f32 %v134, 1.0
  %v238 = vadd.f32 %v136, 1.0
  %v239 = vadd.f32 %v138, 1.0
  %v240 = vadd.f32 %v140, 1.0
  %v241 = vadd.f32 %v142, 1.0
  %v242 = vadd.f32 %v144, 1.0
  %v243 = vadd.f32 %v146, 1.0
  %v244 = vadd.f32 %v148, 1.0
  %v245 = vadd.f32 %v150, 1.0
  %v246 = vadd.f32 %v152, 1.0
  %v247 = vadd.f32 %v154, 1.0
  %v248 = vadd.f32 %v156, 1.0
  %v249 = vadd.f32 %v158, 1.0
  %v250 = vadd.f32 %v160, 1.0
  %v251 = vadd.f32 %v162, 1.0
  %v252 = vadd.f32 %v164, 1.0
  %v253 = vadd.f32 %v166, 1.0
  %v254 = vadd.f32 %v168, 1.0
  %v255 = vadd.f32 %v170, 1.0
  %v256 = vadd.f32 %v172, 1.0
  %v257 = vadd.f32 %v174, 1.0
  %v258 = vadd.f32 %v176, 1.0
  %v259 = vadd.f32 %v178, 1.0
  %v260 = vadd.f32 %v180, 1.0
  %v261 = vadd.f32 %v182, 1.0
  %v262 = vadd.f32 %v184, 1.0
  %v263 = vadd.f32 %v186, 1.0
  %v264 = vadd.f32 %v188, 1.0
  %v265 = vadd.f32 %v190, 1.0
  %v266 = vadd.f32 %v192, 1.0
  %v267 = vadd.f32 %v194, 1.0
  %v268 = vadd.f32 %v196, 1.0
  %v269 = vadd.f32 %v198, 1.0
  %v270 = vadd.f32 %v200, 1.0
  %v271 = vadd.f32 %v202, 1.0
  %v272 = vadd.f32 %v204, 1.0
  %v273 = vadd.f32 %v206, 1.0
  %v274 = vadd.f32 %v208, 1.0
  %v275 = vadd.f32 %v210, 1.0
  %v276 = vadd.f32 %v212, 1.0
  %v277 = vadd.f32 %v214, 1.0
  %v278 = vadd.f32 %v216, 1.0
  %v279 = vadd.f32 %v218, 1.0
  %v280 = vadd.f32 %v220, 1.0
  %v281 = vadd.f32 %v222, 1.0
  %v282 = vadd.f32 %v224, 1.0
  %v283 = vadd.f32 %v226, 1.0
  %v284 = vadd.f32 %v228, 1.0
  %v285 = vadd.f32 %v230, 1.0
  %v286 = vrcp.pop %v231
  %v287 = vmul.f32 1.0, %v286
  %v288 = vrcp.pop %v232
  %v289 = vmul.f32 1.0, %v288
  %v290 = vrcp.pop %v233
  %v291 = vmul.f32 1.0, %v290
  %v292 = vrcp.pop %v234
  %v293 = vmul.f32 1.0, %v292
  %v294 = vrcp.pop %v235
  %v295 = vmul.f32 1.0, %v294
  %v296 = vrcp.pop %v236
  %v297 = vmul.f32 1.0, %v296
  %v298 = vrcp.pop %v237
  %v299 = vmul.f32 1.0, %v298
  %v300 = vrcp.pop %v238
  %v301 = vmul.f32 1.0, %v300
  %v302 = vrcp.pop %v239
  %v303 = vmul.f32 1.0, %v302
  %v304 = vrcp.pop %v240
  %v305 = vmul.f32 1.0, %v304
  %v306 = vrcp.pop %v241
  %v307 = vmul.f32 1.0, %v306
  %v308 = vrcp.pop %v242
  %v309 = vmul.f32 1.0, %v308
  %v310 = vrcp.pop %v243
  %v311 = vmul.f32 1.0, %v310
  %v312 = vrcp.pop %v244
  %v313 = vmul.f32 1.0, %v312
  %v314 = vrcp.pop %v245
  %v315 = vmul.f32 1.0, %v314
  %v316 = vrcp.pop %v246
  %v317 = vmul.f32 1.0, %v316
  %v318 = vrcp.pop %v247
  %v319 = vmul.f32 1.0, %v318
  %v320 = vrcp.pop %v248
  %v321 = vmul.f32 1.0, %v320
  %v322 = vrcp.pop %v249
  %v323 = vmul.f32 1.0, %v322
  %v324 = vrcp.pop %v250
  %v325 = vmul.f32 1.0, %v324
  %v326 = vrcp.pop %v251
  %v327 = vmul.f32 1.0, %v326
  %v328 = vrcp.pop %v252
  %v329 = vmul.f32 1.0, %v328
  %v330 = vrcp.pop %v253
  %v331 = vmul.f32 1.0, %v330
  %v332 = vrcp.pop %v254
  %v333 = vmul.f32 1.0, %v332
  %v334 = vrcp.pop %v255
  %v335 = vmul.f32 1.0, %v334
  %v336 = vrcp.pop %v256
  %v337 = vmul.f32 1.0, %v336
  %v338 = vrcp.pop %v257
  %v339 = vmul.f32 1.0, %v338
  %v340 = vrcp.pop %v258
  %v341 = vmul.f32 1.0, %v340
  %v342 = vrcp.pop %v259
  %v343 = vmul.f32 1.0, %v342
  %v344 = vrcp.pop %v260
  %v345 = vmul.f32 1.0, %v344
  %v346 = vrcp.pop %v261
  %v347 = vmul.f32 1.0, %v346
  %v348 = vrcp.pop %v262
  %v349 = vmul.f32 1.0, %v348
  %v350 = vrcp.pop %v263
  %v351 = vmul.f32 1.0, %v350
  %v352 = vrcp.pop %v264
  %v353 = vmul.f32 1.0, %v352
  %v354 = vrcp.pop %v265
  %v355 = vmul.f32 1.0, %v354
  %v356 = vrcp.pop %v266
  %v357 = vmul.f32 1.0, %v356
  %v358 = vrcp.pop %v267
  %v359 = vmul.f32 1.0, %v358
  %v360 = vrcp.pop %v268
  %v361 = vmul.f32 1.0, %v360
  %v362 = vrcp.pop %v269
  %v363 = vmul.f32 1.0, %v362
  %v364 = vrcp.pop %v270
  %v365 = vmul.f32 1.0, %v364
  %v366 = vrcp.pop %v271
  %v367 = vmul.f32 1.0, %v366
  %v368 = vrcp.pop %v272
  %v369 = vmul.f32 1.0, %v368
  %v370 = vrcp.pop %v273
  %v371 = vmul.f32 1.0, %v370
  %v372 = vrcp.pop %v274
  %v373 = vmul.f32 1.0, %v372
  %v374 = vrcp.pop %v275
  %v375 = vmul.f32 1.0, %v374
  %v376 = vrcp.pop %v276
  %v377 = vmul.f32 1.0, %v376
  %v378 = vrcp.pop %v277
  %v379 = vmul.f32 1.0, %v378
  %v380 = vrcp.pop %v278
  %v381 = vmul.f32 1.0, %v380
  %v382 = vrcp.pop %v279
  %v383 = vmul.f32 1.0, %v382
  %v384 = vrcp.pop %v280
  %v385 = vmul.f32 1.0, %v384
  %v386 = vrcp.pop %v281
  %v387 = vmul.f32 1.0, %v386
  %v388 = vrcp.pop %v282
  %v389 = vmul.f32 1.0, %v388
  %v390 = vrcp.pop %v283
  %v391 = vmul.f32 1.0, %v390
  %v392 = vrcp.pop %v284
  %v393 = vmul.f32 1.0, %v392
  %v394 = vrcp.pop %v285
  %v395 = vmul.f32 1.0, %v394
  %v396 = vld [vmem:[%s1] sm:$0xff]
  %v397 = vld [vmem:[%s1 + $0x8] sm:$0xff]
  %v398 = vld [vmem:[%s1 + $0x10] sm:$0xff]
  %v399 = vld [vmem:[%s1 + $0x18] sm:$0xff]
  %v400 = vld [vmem:[%s1 + $0x20] sm:$0xff]
  %v401 = vld [vmem:[%s1 + $0x28] sm:$0xff]
  %v402 = vld [vmem:[%s1 + $0x30] sm:$0xff]
  %v403 = vld [vmem:[%s1 + $0x38] sm:$0xff]
  %v404 = vld [vmem:[%s1 + $0x40] sm:$0xff]
  %v405 = vld [vmem:[%s1 + $0x48] sm:$0xff]
  %v406 = vld [vmem:[%s1 + $0x50] sm:$0xff]
  %v407 = vld [vmem:[%s1 + $0x58] sm:$0xff]
  %v408 = vld [vmem:[%s1 + $0x60] sm:$0xff]
  %v409 = vld [vmem:[%s1 + $0x68] sm:$0xff]
  %v410 = vld [vmem:[%s1 + $0x70] sm:$0xff]
  %v411 = vld [vmem:[%s1 + $0x78] sm:$0xff]
  %v412 = vld [vmem:[%s1 + $0x80] sm:$0xff]
  %v413 = vld [vmem:[%s1 + $0x88] sm:$0xff]
  %v414 = vld [vmem:[%s1 + $0x90] sm:$0xff]
  %v415 = vld [vmem:[%s1 + $0x98] sm:$0xff]
  %v416 = vld [vmem:[%s1 + $0xa0] sm:$0xff]
  %v417 = vld [vmem:[%s1 + $0xa8] sm:$0xff]
  %v418 = vld [vmem:[%s1 + $0xb0] sm:$0xff]
  %v419 = vld [vmem:[%s1 + $0xb8] sm:$0xff]
  %v420 = vld [vmem:[%s1 + $0xc0] sm:$0xff]
  %v421 = vld [vmem:[%s1 + $0xc8] sm:$0xff]
  %v422 = vld [vmem:[%s1 + $0xd0] sm:$0xff]
  %v423 = vld [vmem:[%s1 + $0xd8] sm:$0xff]
  %v424 = vld [vmem:[%s1 + $0xe0] sm:$0xff]
  %v425 = vld [vmem:[%s1 + $0xe8] sm:$0xff]
  %v426 = vld [vmem:[%s1 + $0xf0] sm:$0xff]
  %v427 = vld [vmem:[%s1 + $0xf8] sm:$0xff]
  %v428 = vld [vmem:[%s1 + $0x100] sm:$0xff]
  %v429 = vld [vmem:[%s1 + $0x108] sm:$0xff]
  %v430 = vld [vmem:[%s1 + $0x110] sm:$0xff]
  %v431 = vld [vmem:[%s1 + $0x118] sm:$0xff]
  %v432 = vld [vmem:[%s1 + $0x120] sm:$0xff]
  %v433 = vld [vmem:[%s1 + $0x128] sm:$0xff]
  %v434 = vld [vmem:[%s1 + $0x130] sm:$0xff]
  %v435 = vld [vmem:[%s1 + $0x138] sm:$0xff]
  %v436 = vld [vmem:[%s1 + $0x140] sm:$0xff]
  %v437 = vld [vmem:[%s1 + $0x148] sm:$0xff]
  %v438 = vld [vmem:[%s1 + $0x150] sm:$0xff]
  %v439 = vld [vmem:[%s1 + $0x158] sm:$0xff]
  %v440 = vld [vmem:[%s1 + $0x160] sm:$0xff]
  %v441 = vld [vmem:[%s1 + $0x168] sm:$0xff]
  %v442 = vld [vmem:[%s1 + $0x170] sm:$0xff]
  %v443 = vld [vmem:[%s1 + $0x178] sm:$0xff]
  %v444 = vld [vmem:[%s1 + $0x180] sm:$0xff]
  %v445 = vld [vmem:[%s1 + $0x188] sm:$0xff]
  %v446 = vld [vmem:[%s1 + $0x190] sm:$0xff]
  %v447 = vld [vmem:[%s1 + $0x198] sm:$0xff]
  %v448 = vld [vmem:[%s1 + $0x1a0] sm:$0xff]
  %v449 = vld [vmem:[%s1 + $0x1a8] sm:$0xff]
  %v450 = vld [vmem:[%s1 + $0x1b0] sm:$0xff]
  %452 = vset.pattern.permute.xlu0 0
  %453 = vperm.xlu0 %452, %v287
  %v454 = vpop.permute.xlu0 %453
  %457 = vset.pattern.permute.xlu0 0
  %458 = vperm.xlu0 %457, %v289
  %v459 = vpop.permute.xlu0 %458
  %462 = vset.pattern.permute.xlu0 0
  %463 = vperm.xlu0 %462, %v291
  %v464 = vpop.permute.xlu0 %463
  %467 = vset.pattern.permute.xlu0 0
  %468 = vperm.xlu0 %467, %v293
  %v469 = vpop.permute.xlu0 %468
  %472 = vset.pattern.permute.xlu0 0
  %473 = vperm.xlu0 %472, %v295
  %v474 = vpop.permute.xlu0 %473
  %477 = vset.pattern.permute.xlu0 0
  %478 = vperm.xlu0 %477, %v297
  %v479 = vpop.permute.xlu0 %478
  %482 = vset.pattern.permute.xlu0 0
  %483 = vperm.xlu0 %482, %v299
  %v484 = vpop.permute.xlu0 %483
  %487 = vset.pattern.permute.xlu0 0
  %488 = vperm.xlu0 %487, %v301
  %v489 = vpop.permute.xlu0 %488
  %492 = vset.pattern.permute.xlu0 0
  %493 = vperm.xlu0 %492, %v303
  %v494 = vpop.permute.xlu0 %493
  %497 = vset.pattern.permute.xlu0 0
  %498 = vperm.xlu0 %497, %v305
  %v499 = vpop.permute.xlu0 %498
  %502 = vset.pattern.permute.xlu0 0
  %503 = vperm.xlu0 %502, %v307
  %v504 = vpop.permute.xlu0 %503
  %507 = vset.pattern.permute.xlu0 0
  %508 = vperm.xlu0 %507, %v309
  %v509 = vpop.permute.xlu0 %508
  %512 = vset.pattern.permute.xlu0 0
  %513 = vperm.xlu0 %512, %v311
  %v514 = vpop.permute.xlu0 %513
  %517 = vset.pattern.permute.xlu0 0
  %518 = vperm.xlu0 %517, %v313
  %v519 = vpop.permute.xlu0 %518
  %522 = vset.pattern.permute.xlu0 0
  %523 = vperm.xlu0 %522, %v315
  %v524 = vpop.permute.xlu0 %523
  %527 = vset.pattern.permute.xlu0 0
  %528 = vperm.xlu0 %527, %v317
  %v529 = vpop.permute.xlu0 %528
  %532 = vset.pattern.permute.xlu0 0
  %533 = vperm.xlu0 %532, %v319
  %v534 = vpop.permute.xlu0 %533
  %537 = vset.pattern.permute.xlu0 0
  %538 = vperm.xlu0 %537, %v321
  %v539 = vpop.permute.xlu0 %538
  %542 = vset.pattern.permute.xlu0 0
  %543 = vperm.xlu0 %542, %v323
  %v544 = vpop.permute.xlu0 %543
  %547 = vset.pattern.permute.xlu0 0
  %548 = vperm.xlu0 %547, %v325
  %v549 = vpop.permute.xlu0 %548
  %552 = vset.pattern.permute.xlu0 0
  %553 = vperm.xlu0 %552, %v327
  %v554 = vpop.permute.xlu0 %553
  %557 = vset.pattern.permute.xlu0 0
  %558 = vperm.xlu0 %557, %v329
  %v559 = vpop.permute.xlu0 %558
  %562 = vset.pattern.permute.xlu0 0
  %563 = vperm.xlu0 %562, %v331
  %v564 = vpop.permute.xlu0 %563
  %567 = vset.pattern.permute.xlu0 0
  %568 = vperm.xlu0 %567, %v333
  %v569 = vpop.permute.xlu0 %568
  %572 = vset.pattern.permute.xlu0 0
  %573 = vperm.xlu0 %572, %v335
  %v574 = vpop.permute.xlu0 %573
  %577 = vset.pattern.permute.xlu0 0
  %578 = vperm.xlu0 %577, %v337
  %v579 = vpop.permute.xlu0 %578
  %582 = vset.pattern.permute.xlu0 0
  %583 = vperm.xlu0 %582, %v339
  %v584 = vpop.permute.xlu0 %583
  %587 = vset.pattern.permute.xlu0 0
  %588 = vperm.xlu0 %587, %v341
  %v589 = vpop.permute.xlu0 %588
  %592 = vset.pattern.permute.xlu0 0
  %593 = vperm.xlu0 %592, %v343
  %v594 = vpop.permute.xlu0 %593
  %597 = vset.pattern.permute.xlu0 0
  %598 = vperm.xlu0 %597, %v345
  %v599 = vpop.permute.xlu0 %598
  %602 = vset.pattern.permute.xlu0 0
  %603 = vperm.xlu0 %602, %v347
  %v604 = vpop.permute.xlu0 %603
  %607 = vset.pattern.permute.xlu0 0
  %608 = vperm.xlu0 %607, %v349
  %v609 = vpop.permute.xlu0 %608
  %612 = vset.pattern.permute.xlu0 0
  %613 = vperm.xlu0 %612, %v351
  %v614 = vpop.permute.xlu0 %613
  %617 = vset.pattern.permute.xlu0 0
  %618 = vperm.xlu0 %617, %v353
  %v619 = vpop.permute.xlu0 %618
  %622 = vset.pattern.permute.xlu0 0
  %623 = vperm.xlu0 %622, %v355
  %v624 = vpop.permute.xlu0 %623
  %627 = vset.pattern.permute.xlu0 0
  %628 = vperm.xlu0 %627, %v357
  %v629 = vpop.permute.xlu0 %628
  %632 = vset.pattern.permute.xlu0 0
  %633 = vperm.xlu0 %632, %v359
  %v634 = vpop.permute.xlu0 %633
  %637 = vset.pattern.permute.xlu0 0
  %638 = vperm.xlu0 %637, %v361
  %v639 = vpop.permute.xlu0 %638
  %642 = vset.pattern.permute.xlu0 0
  %643 = vperm.xlu0 %642, %v363
  %v644 = vpop.permute.xlu0 %643
  %647 = vset.pattern.permute.xlu0 0
  %648 = vperm.xlu0 %647, %v365
  %v649 = vpop.permute.xlu0 %648
  %652 = vset.pattern.permute.xlu0 0
  %653 = vperm.xlu0 %652, %v367
  %v654 = vpop.permute.xlu0 %653
  %657 = vset.pattern.permute.xlu0 0
  %658 = vperm.xlu0 %657, %v369
  %v659 = vpop.permute.xlu0 %658
  %662 = vset.pattern.permute.xlu0 0
  %663 = vperm.xlu0 %662, %v371
  %v664 = vpop.permute.xlu0 %663
  %667 = vset.pattern.permute.xlu0 0
  %668 = vperm.xlu0 %667, %v373
  %v669 = vpop.permute.xlu0 %668
  %672 = vset.pattern.permute.xlu0 0
  %673 = vperm.xlu0 %672, %v375
  %v674 = vpop.permute.xlu0 %673
  %677 = vset.pattern.permute.xlu0 0
  %678 = vperm.xlu0 %677, %v377
  %v679 = vpop.permute.xlu0 %678
  %682 = vset.pattern.permute.xlu0 0
  %683 = vperm.xlu0 %682, %v379
  %v684 = vpop.permute.xlu0 %683
  %687 = vset.pattern.permute.xlu0 0
  %688 = vperm.xlu0 %687, %v381
  %v689 = vpop.permute.xlu0 %688
  %692 = vset.pattern.permute.xlu0 0
  %693 = vperm.xlu0 %692, %v383
  %v694 = vpop.permute.xlu0 %693
  %697 = vset.pattern.permute.xlu0 0
  %698 = vperm.xlu0 %697, %v385
  %v699 = vpop.permute.xlu0 %698
  %702 = vset.pattern.permute.xlu0 0
  %703 = vperm.xlu0 %702, %v387
  %v704 = vpop.permute.xlu0 %703
  %707 = vset.pattern.permute.xlu0 0
  %708 = vperm.xlu0 %707, %v389
  %v709 = vpop.permute.xlu0 %708
  %712 = vset.pattern.permute.xlu0 0
  %713 = vperm.xlu0 %712, %v391
  %v714 = vpop.permute.xlu0 %713
  %717 = vset.pattern.permute.xlu0 0
  %718 = vperm.xlu0 %717, %v393
  %v719 = vpop.permute.xlu0 %718
  %722 = vset.pattern.permute.xlu0 0
  %723 = vperm.xlu0 %722, %v395
  %v724 = vpop.permute.xlu0 %723
  %v726 = vmul.f32 %v454, %v396
  %v727 = vmul.f32 %v459, %v397
  %v728 = vmul.f32 %v464, %v398
  %v729 = vmul.f32 %v469, %v399
  %v730 = vmul.f32 %v474, %v400
  %v731 = vmul.f32 %v479, %v401
  %v732 = vmul.f32 %v484, %v402
  %v733 = vmul.f32 %v489, %v403
  %v734 = vmul.f32 %v494, %v404
  %v735 = vmul.f32 %v499, %v405
  %v736 = vmul.f32 %v504, %v406
  %v737 = vmul.f32 %v509, %v407
  %v738 = vmul.f32 %v514, %v408
  %v739 = vmul.f32 %v519, %v409
  %v740 = vmul.f32 %v524, %v410
  %v741 = vmul.f32 %v529, %v411
  %v742 = vmul.f32 %v534, %v412
  %v743 = vmul.f32 %v539, %v413
  %v744 = vmul.f32 %v544, %v414
  %v745 = vmul.f32 %v549, %v415
  %v746 = vmul.f32 %v554, %v416
  %v747 = vmul.f32 %v559, %v417
  %v748 = vmul.f32 %v564, %v418
  %v749 = vmul.f32 %v569, %v419
  %v750 = vmul.f32 %v574, %v420
  %v751 = vmul.f32 %v579, %v421
  %v752 = vmul.f32 %v584, %v422
  %v753 = vmul.f32 %v589, %v423
  %v754 = vmul.f32 %v594, %v424
  %v755 = vmul.f32 %v599, %v425
  %v756 = vmul.f32 %v604, %v426
  %v757 = vmul.f32 %v609, %v427
  %v758 = vmul.f32 %v614, %v428
  %v759 = vmul.f32 %v619, %v429
  %v760 = vmul.f32 %v624, %v430
  %v761 = vmul.f32 %v629, %v431
  %v762 = vmul.f32 %v634, %v432
  %v763 = vmul.f32 %v639, %v433
  %v764 = vmul.f32 %v644, %v434
  %v765 = vmul.f32 %v649, %v435
  %v766 = vmul.f32 %v654, %v436
  %v767 = vmul.f32 %v659, %v437
  %v768 = vmul.f32 %v664, %v438
  %v769 = vmul.f32 %v669, %v439
  %v770 = vmul.f32 %v674, %v440
  %v771 = vmul.f32 %v679, %v441
  %v772 = vmul.f32 %v684, %v442
  %v773 = vmul.f32 %v689, %v443
  %v774 = vmul.f32 %v694, %v444
  %v775 = vmul.f32 %v699, %v445
  %v776 = vmul.f32 %v704, %v446
  %v777 = vmul.f32 %v709, %v447
  %v778 = vmul.f32 %v714, %v448
  %v779 = vmul.f32 %v719, %v449
  %v780 = vmul.f32 %v724, %v450
  %vm781 = vcmask 400384
  %782 = vst.msk [vmem:[%s2] sm:$0xff] %vm781, %v726
  %783 = vst.msk [vmem:[%s2 + $0x8] sm:$0xff] %vm781, %v727
  %784 = vst.msk [vmem:[%s2 + $0x10] sm:$0xff] %vm781, %v728
  %785 = vst.msk [vmem:[%s2 + $0x18] sm:$0xff] %vm781, %v729
  %786 = vst.msk [vmem:[%s2 + $0x20] sm:$0xff] %vm781, %v730
  %787 = vst.msk [vmem:[%s2 + $0x28] sm:$0xff] %vm781, %v731
  %788 = vst.msk [vmem:[%s2 + $0x30] sm:$0xff] %vm781, %v732
  %789 = vst.msk [vmem:[%s2 + $0x38] sm:$0xff] %vm781, %v733
  %790 = vst.msk [vmem:[%s2 + $0x40] sm:$0xff] %vm781, %v734
  %791 = vst.msk [vmem:[%s2 + $0x48] sm:$0xff] %vm781, %v735
  %792 = vst.msk [vmem:[%s2 + $0x50] sm:$0xff] %vm781, %v736
  %793 = vst.msk [vmem:[%s2 + $0x58] sm:$0xff] %vm781, %v737
  %794 = vst.msk [vmem:[%s2 + $0x60] sm:$0xff] %vm781, %v738
  %795 = vst.msk [vmem:[%s2 + $0x68] sm:$0xff] %vm781, %v739
  %796 = vst.msk [vmem:[%s2 + $0x70] sm:$0xff] %vm781, %v740
  %797 = vst.msk [vmem:[%s2 + $0x78] sm:$0xff] %vm781, %v741
  %798 = vst.msk [vmem:[%s2 + $0x80] sm:$0xff] %vm781, %v742
  %799 = vst.msk [vmem:[%s2 + $0x88] sm:$0xff] %vm781, %v743
  %800 = vst.msk [vmem:[%s2 + $0x90] sm:$0xff] %vm781, %v744
  %801 = vst.msk [vmem:[%s2 + $0x98] sm:$0xff] %vm781, %v745
  %802 = vst.msk [vmem:[%s2 + $0xa0] sm:$0xff] %vm781, %v746
  %803 = vst.msk [vmem:[%s2 + $0xa8] sm:$0xff] %vm781, %v747
  %804 = vst.msk [vmem:[%s2 + $0xb0] sm:$0xff] %vm781, %v748
  %805 = vst.msk [vmem:[%s2 + $0xb8] sm:$0xff] %vm781, %v749
  %806 = vst.msk [vmem:[%s2 + $0xc0] sm:$0xff] %vm781, %v750
  %807 = vst.msk [vmem:[%s2 + $0xc8] sm:$0xff] %vm781, %v751
  %808 = vst.msk [vmem:[%s2 + $0xd0] sm:$0xff] %vm781, %v752
  %809 = vst.msk [vmem:[%s2 + $0xd8] sm:$0xff] %vm781, %v753
  %810 = vst.msk [vmem:[%s2 + $0xe0] sm:$0xff] %vm781, %v754
  %811 = vst.msk [vmem:[%s2 + $0xe8] sm:$0xff] %vm781, %v755
  %812 = vst.msk [vmem:[%s2 + $0xf0] sm:$0xff] %vm781, %v756
  %813 = vst.msk [vmem:[%s2 + $0xf8] sm:$0xff] %vm781, %v757
  %814 = vst.msk [vmem:[%s2 + $0x100] sm:$0xff] %vm781, %v758
  %815 = vst.msk [vmem:[%s2 + $0x108] sm:$0xff] %vm781, %v759
  %816 = vst.msk [vmem:[%s2 + $0x110] sm:$0xff] %vm781, %v760
  %817 = vst.msk [vmem:[%s2 + $0x118] sm:$0xff] %vm781, %v761
  %818 = vst.msk [vmem:[%s2 + $0x120] sm:$0xff] %vm781, %v762
  %819 = vst.msk [vmem:[%s2 + $0x128] sm:$0xff] %vm781, %v763
  %820 = vst.msk [vmem:[%s2 + $0x130] sm:$0xff] %vm781, %v764
  %821 = vst.msk [vmem:[%s2 + $0x138] sm:$0xff] %vm781, %v765
  %822 = vst.msk [vmem:[%s2 + $0x140] sm:$0xff] %vm781, %v766
  %823 = vst.msk [vmem:[%s2 + $0x148] sm:$0xff] %vm781, %v767
  %824 = vst.msk [vmem:[%s2 + $0x150] sm:$0xff] %vm781, %v768
  %825 = vst.msk [vmem:[%s2 + $0x158] sm:$0xff] %vm781, %v769
  %826 = vst.msk [vmem:[%s2 + $0x160] sm:$0xff] %vm781, %v770
  %827 = vst.msk [vmem:[%s2 + $0x168] sm:$0xff] %vm781, %v771
  %828 = vst.msk [vmem:[%s2 + $0x170] sm:$0xff] %vm781, %v772
  %829 = vst.msk [vmem:[%s2 + $0x178] sm:$0xff] %vm781, %v773
  %830 = vst.msk [vmem:[%s2 + $0x180] sm:$0xff] %vm781, %v774
  %831 = vst.msk [vmem:[%s2 + $0x188] sm:$0xff] %vm781, %v775
  %832 = vst.msk [vmem:[%s2 + $0x190] sm:$0xff] %vm781, %v776
  %833 = vst.msk [vmem:[%s2 + $0x198] sm:$0xff] %vm781, %v777
  %834 = vst.msk [vmem:[%s2 + $0x1a0] sm:$0xff] %vm781, %v778
  %835 = vst.msk [vmem:[%s2 + $0x1a8] sm:$0xff] %vm781, %v779
  %836 = vst.msk [vmem:[%s2 + $0x1b0] sm:$0xff] %vm781, %v780
  // Predicated region
  $region10: #{tpu_custom_call.1} parent=0 // pred_check
    _
  $region11: #{tpu_custom_call.1} parent=0 // pred_check_branch
    %838 = sbr.rel (0) target = $region13
  $region12: #{tpu_custom_call.1} parent=0 // pred_region
    _
  $region13: #{tpu_custom_call.1} parent=0 // pred_fallthru
    _
  // Predicated region
  $region14: #{tpu_custom_call.1} parent=0 // pred_check
    _
  $region15: #{tpu_custom_call.1} parent=0 // pred_check_branch
    %840 = sbr.rel (0) target = $region17
  $region16: #{tpu_custom_call.1} parent=0 // pred_region
    _
  $region17: #{tpu_custom_call.1} parent=0 // pred_fallthru
    _

</llo_original>
